<compile_context>
chip_gen: v7x
topology: tpu7x:2x2x1
jax: 0.10.0
libtpu: 0.0.40
codegen_flags: <defaults>
</compile_context>

<pallas_src>
import functools

import jax
import jax.numpy as jnp
from jax.experimental import pallas as pl
from jax.experimental.pallas import tpu as pltpu


# ----------------------------------------------------------------------------
# VMEM budgeting / batch-tile selection
# ----------------------------------------------------------------------------
_VMEM_BUDGET_BYTES = 20 * 1024 * 1024   # conservative: leaves headroom on v7x (64 MiB VMEM)


def _round_lanes(n):
    return -(-n // 128) * 128


def _round_sublanes(n):
    return -(-n // 8) * 8


def _block_vmem_bytes(bt, L, W, Dw, nb, H):
    """Rough per-grid-step VMEM footprint (double-buffered I/O + scratch)."""
    btl = _round_sublanes(bt * L)
    f32 = 4
    io = 2 * f32 * btl * (_round_lanes(W * Dw) + _round_lanes(W * nb)
                          + 2 * _round_lanes(H) + _round_lanes(W))
    scratch = f32 * W * btl * _round_lanes(H)            # per-slot projections
    weights = 2 * f32 * (_round_sublanes(Dw) + _round_sublanes(nb) + 8) * _round_lanes(H)
    return io + scratch + weights


def _pick_batch_tile(B, L, W, Dw, nb, H):
    """Largest divisor of B whose block fits the VMEM budget (8-row aligned)."""
    best = None
    for bt in range(1, B + 1):
        if B % bt != 0:
            continue
        if (bt * L) % 8 != 0 and bt != B:
            continue                                     # (8,128) block-shape rule
        if bt * L > 4096:
            continue                                     # diminishing returns
        if _block_vmem_bytes(bt, L, W, Dw, nb, H) > _VMEM_BUDGET_BYTES:
            continue
        best = bt
    if best is None:
        best = 1 if (L % 8 == 0 or B == 1) else B
    return best


# ----------------------------------------------------------------------------
# Kernel
# ----------------------------------------------------------------------------
def _encoder_kernel(lex_ref, oh_ref, q_ref, mask_ref, ww_ref, wb_ref, b_ref,
                    out_ref, proj_sc, *, W, Dw, nb):
    # lex_ref : (BtL, W*Dw) f32   lexicon word embeddings, slots along lanes
    # oh_ref  : (BtL, W*nb) f32   BMES one-hot, slots along lanes
    # q_ref   : (BtL, H)    f32   bert_seqs_embed (query / residual)
    # mask_ref: (BtL, W)    f32   att_lexicon_mask
    # ww_ref  : (Dw, H)     bf16  word rows of bmes_lexicon2bert weight
    # wb_ref  : (nb, H)     bf16  BMES rows of bmes_lexicon2bert weight
    # b_ref   : (1, H)      f32   bias
    # proj_sc : (W, BtL, H) f32   VMEM scratch for per-slot projections
    q = q_ref[...]
    ww = ww_ref[...]
    wb = wb_ref[...]
    bias = b_ref[...]

    lex = lex_ref[...].astype(jnp.bfloat16)
    oh = oh_ref[...].astype(jnp.bfloat16)

    # Per lexicon slot (static unroll, W = lexicon_window_size is small):
    # project to BERT space on the MXU (bf16 operands, f32 accumulate), stash
    # the projection, and compute its attention logit <proj, q>.
    score_cols = []
    for w in range(W):
        lex_w = lex[:, w * Dw:(w + 1) * Dw]              # (BtL, Dw)
        oh_w = oh[:, w * nb:(w + 1) * nb]                # (BtL, nb)
        p = (jnp.dot(lex_w, ww, preferred_element_type=jnp.float32)
             + jnp.dot(oh_w, wb, preferred_element_type=jnp.float32)
             + bias)                                     # (BtL, H) f32
        proj_sc[w] = p
        score_cols.append(jnp.sum(p * q, axis=-1, keepdims=True))   # (BtL, 1)

    # Masked, numerically-stable softmax over the W lexicon slots (f32 path).
    scores = jnp.concatenate(score_cols, axis=-1)        # (BtL, W)
    mask = mask_ref[...]
    scores = jnp.where(mask == 0.0, jnp.float32(-1e9), scores)
    scores = scores - jnp.max(scores, axis=-1, keepdims=True)
    e = jnp.exp(scores)
    denom = jnp.sum(e, axis=-1, keepdims=True)
    att = e * pl.reciprocal(denom, approx=True)          # EUP reciprocal

    # Attention-weighted sum of projections, fused with the residual add.
    acc = q
    for w in range(W):
        acc = acc + att[:, w:w + 1] * proj_sc[w]
    out_ref[...] = acc


# ----------------------------------------------------------------------------
# Wrapper
# ----------------------------------------------------------------------------
def bert_bmes_lexicon_attention_add_forward(bert_seqs_embed, seqs_lexicon_embed,
                                            bmes_one_hot, att_lexicon_mask,
                                            proj_w, proj_b):
    B, L, H = bert_seqs_embed.shape
    W = seqs_lexicon_embed.shape[2]
    Dw = seqs_lexicon_embed.shape[3]
    nb = bmes_one_hot.shape[-1]

    # Token-major 2-D slabs (contiguous, free reshapes). No HBM concat of
    # [one_hot, lexicon_embed] is ever materialized.
    lex2 = seqs_lexicon_embed.reshape(B * L, W * Dw).astype(jnp.float32)
    oh2 = bmes_one_hot.reshape(B * L, W * nb).astype(jnp.float32)
    q2 = bert_seqs_embed.reshape(B * L, H).astype(jnp.float32)
    mask2 = att_lexicon_mask.reshape(B * L, W).astype(jnp.float32)

    # Split the linear layer into its BMES rows and word rows (bf16 operands).
    w_bmes = proj_w[:nb].astype(jnp.bfloat16)            # (nb, H)
    w_word = proj_w[nb:].astype(jnp.bfloat16)            # (Dw, H)
    bias = proj_b.reshape(1, H).astype(jnp.float32)

    Bt = _pick_batch_tile(B, L, W, Dw, nb, H)
    BtL = Bt * L
    grid = (B // Bt,)

    blk_bytes = _block_vmem_bytes(Bt, L, W, Dw, nb, H)
    compiler_kwargs = dict(dimension_semantics=("parallel",))
    if blk_bytes > 12 * 1024 * 1024:
        # Large blocks: raise the scoped VMEM limit explicitly (stays well
        # below v7x's 64 MiB physical VMEM).
        compiler_kwargs["vmem_limit_bytes"] = min(64 * 1024 * 1024,
                                                  blk_bytes + 8 * 1024 * 1024)

    kernel = functools.partial(_encoder_kernel, W=W, Dw=Dw, nb=nb)

    out2 = pl.pallas_call(
        kernel,
        out_shape=jax.ShapeDtypeStruct((B * L, H), jnp.float32),
        grid_spec=pltpu.PrefetchScalarGridSpec(
            num_scalar_prefetch=0,
            grid=grid,
            in_specs=[
                pl.BlockSpec((BtL, W * Dw), lambda b: (b, 0)),   # lexicon embed
                pl.BlockSpec((BtL, W * nb), lambda b: (b, 0)),   # BMES one-hot
                pl.BlockSpec((BtL, H), lambda b: (b, 0)),        # bert embed
                pl.BlockSpec((BtL, W), lambda b: (b, 0)),        # lexicon mask
                pl.BlockSpec((Dw, H), lambda b: (0, 0)),         # word-proj weight
                pl.BlockSpec((nb, H), lambda b: (0, 0)),         # bmes-proj weight
                pl.BlockSpec((1, H), lambda b: (0, 0)),          # bias
            ],
            out_specs=pl.BlockSpec((BtL, H), lambda b: (b, 0)),
            scratch_shapes=[pltpu.VMEM((W, BtL, H), jnp.float32)],
        ),
        compiler_params=pltpu.CompilerParams(**compiler_kwargs),
    )(lex2, oh2, q2, mask2, w_word, w_bmes, bias)
    return out2.reshape(B, L, H)


# ----------------------------------------------------------------------------
# Demo / correctness check
# ----------------------------------------------------------------------------
if __name__ == "__main__":
    key = jax.random.PRNGKey(0)
    # Small shapes consistent with the module semantics.
    B, L = 2, 8                      # batch, token sequence length
    lexicon_window_size = 4          # max_matched_lexcons == lexicon_window_size
    W = lexicon_window_size
    num_bmes = 4                     # group_num=3 -> {'B','M','E','[UNK]'}
    word_size = 28                   # lexicon word-embedding size (Din = 4 + 28 = 32)
    H = 64                           # synthetic bert.config.hidden_size
    vocab = 100

    ks = jax.random.split(key, 8)

    # Synthetic tensors (what tokenize() would have produced).
    seqs_token_ids = jax.random.randint(ks[0], (B, L), 0, vocab)
    seqs_lexicon_embed = jax.random.normal(ks[1], (B, L, W, word_size), jnp.float32)
    seqs_lexicon_bmes_ids = jax.random.randint(ks[2], (B, L, W), 0, num_bmes)
    att_lexicon_mask = (jax.random.uniform(ks[3], (B, L, W)) > 0.3).astype(jnp.uint8)
    att_lexicon_mask = att_lexicon_mask.at[:, :, 0].set(1)   # >=1 valid lexicon per token
    att_token_mask = jnp.ones((B, L), jnp.uint8)

    # Deterministic parameters.
    # TODO(synk): the pretrained BERT transformer stack is not replicated; it is
    # stood in for by a deterministic token-embedding lookup producing (B, L, H).
    bert_emb_table = jax.random.normal(ks[4], (vocab, H), jnp.float32) * 0.1
    proj_w = jax.random.normal(ks[5], (num_bmes + word_size, H), jnp.float32) * 0.05
    proj_b = jax.random.normal(ks[6], (H,), jnp.float32) * 0.01

    bert_seqs_embed = (bert_emb_table[seqs_token_ids]
                       * att_token_mask[..., None].astype(jnp.float32))
    # one-hot of bmes ids (torch scatter_ equivalent) — glue in plain JAX
    bmes_one_hot = jax.nn.one_hot(seqs_lexicon_bmes_ids, num_bmes, dtype=jnp.float32)

    out = bert_bmes_lexicon_attention_add_forward(
        bert_seqs_embed, seqs_lexicon_embed, bmes_one_hot, att_lexicon_mask,
        proj_w, proj_b)
    out = jax.block_until_ready(out)

    # Plain-JAX f32 reference for the same forward pass.
    cat = jnp.concatenate([bmes_one_hot, seqs_lexicon_embed], axis=-1)
    proj = cat @ proj_w + proj_b
    scores = jnp.einsum('blwh,blh->blw', proj, bert_seqs_embed)
    scores = jnp.where(att_lexicon_mask == 0, -1e9, scores)
    att = jax.nn.softmax(scores, axis=-1)
    ref = bert_seqs_embed + jnp.einsum('blw,blwh->blh', att, proj)

    err = float(jnp.max(jnp.abs(out - ref)))
    # Tolerance loosened slightly: kernel uses bf16 MXU operands (f32 accumulate)
    # and an approximate EUP reciprocal in the softmax normalization.
    assert jnp.allclose(out, ref, atol=1e-2, rtol=1e-2), f"max abs err = {err}"
    print("KERNEL_OK")
</pallas_src>

<mosaic_0001>
module attributes {stable_mosaic.version = 11 : i64} {
  func.func @_encoder_kernel(%arg0: i32, %arg1: memref<16x112xf32, #tpu.memory_space<vmem>>, %arg2: memref<16x16xf32, #tpu.memory_space<vmem>>, %arg3: memref<16x64xf32, #tpu.memory_space<vmem>>, %arg4: memref<16x4xf32, #tpu.memory_space<vmem>>, %arg5: memref<28x64xbf16, #tpu.memory_space<vmem>>, %arg6: memref<4x64xbf16, #tpu.memory_space<vmem>>, %arg7: memref<1x64xf32, #tpu.memory_space<vmem>>, %arg8: memref<16x64xf32, #tpu.memory_space<vmem>>, %arg9: memref<4x16x64xf32, #tpu.memory_space<vmem>>) attributes {dimension_semantics = [#tpu.dimension_semantics<parallel>], iteration_bounds = array<i64: 1>, scalar_prefetch = 0 : i64, scratch_operands = 1 : i64, tpu.core_type = #tpu.core_type<tc>, window_params = [{transform_indices = @transform_0, window_bounds = array<i64: 16, 112>}, {transform_indices = @transform_1, window_bounds = array<i64: 16, 16>}, {transform_indices = @transform_2, window_bounds = array<i64: 16, 64>}, {transform_indices = @transform_3, window_bounds = array<i64: 16, 4>}, {pipeline_mode = #tpu.pipeline_mode<synchronous>, transform_indices = @transform_4, window_bounds = array<i64: 28, 64>}, {pipeline_mode = #tpu.pipeline_mode<synchronous>, transform_indices = @transform_5, window_bounds = array<i64: 4, 64>}, {pipeline_mode = #tpu.pipeline_mode<synchronous>, transform_indices = @transform_6, window_bounds = array<i64: 1, 64>}, {transform_indices = @transform_7, window_bounds = array<i64: 16, 64>}]} {
    %c0 = arith.constant 0 : index
    %c0_0 = arith.constant 0 : index
    %0 = vector.load %arg3[%c0, %c0_0] : memref<16x64xf32, #tpu.memory_space<vmem>>, vector<16x64xf32>
    %c0_1 = arith.constant 0 : index
    %c0_2 = arith.constant 0 : index
    %1 = vector.load %arg5[%c0_1, %c0_2] : memref<28x64xbf16, #tpu.memory_space<vmem>>, vector<28x64xbf16>
    %c0_3 = arith.constant 0 : index
    %c0_4 = arith.constant 0 : index
    %2 = vector.load %arg6[%c0_3, %c0_4] : memref<4x64xbf16, #tpu.memory_space<vmem>>, vector<4x64xbf16>
    %c0_5 = arith.constant 0 : index
    %c0_6 = arith.constant 0 : index
    %3 = vector.load %arg7[%c0_5, %c0_6] : memref<1x64xf32, #tpu.memory_space<vmem>>, vector<1x64xf32>
    %c0_7 = arith.constant 0 : index
    %c0_8 = arith.constant 0 : index
    %4 = vector.load %arg1[%c0_7, %c0_8] : memref<16x112xf32, #tpu.memory_space<vmem>>, vector<16x112xf32>
    %5 = arith.truncf %4 : vector<16x112xf32> to vector<16x112xbf16>
    %c0_9 = arith.constant 0 : index
    %c0_10 = arith.constant 0 : index
    %6 = vector.load %arg2[%c0_9, %c0_10] : memref<16x16xf32, #tpu.memory_space<vmem>>, vector<16x16xf32>
    %7 = arith.truncf %6 : vector<16x16xf32> to vector<16x16xbf16>
    %8 = vector.extract_strided_slice %5 {offsets = [0, 0], sizes = [16, 28], strides = [1, 1]} : vector<16x112xbf16> to vector<16x28xbf16>
    %9 = vector.extract_strided_slice %7 {offsets = [0, 0], sizes = [16, 4], strides = [1, 1]} : vector<16x16xbf16> to vector<16x4xbf16>
    %cst = arith.constant dense<0.000000e+00> : vector<16x64xf32>
    %10 = tpu.matmul %8, %1, %cst {dimension_numbers = #tpu.dot_dimension_numbers<[1], [0], [0], [1], [0, 0, 1, 1], [], []>} : vector<16x28xbf16>, vector<28x64xbf16>, vector<16x64xf32> -> vector<16x64xf32>
    %cst_11 = arith.constant dense<0.000000e+00> : vector<16x64xf32>
    %11 = tpu.matmul %9, %2, %cst_11 {dimension_numbers = #tpu.dot_dimension_numbers<[1], [0], [0], [1], [0, 0, 1, 1], [], []>} : vector<16x4xbf16>, vector<4x64xbf16>, vector<16x64xf32> -> vector<16x64xf32>
    %12 = arith.addf %10, %11 : vector<16x64xf32>
    %13 = vector.broadcast %3 : vector<1x64xf32> to vector<16x64xf32>
    %14 = arith.addf %12, %13 : vector<16x64xf32>
    %c0_12 = arith.constant 0 : index
    %c0_13 = arith.constant 0 : index
    %c0_14 = arith.constant 0 : index
    %15 = vector.load %arg9[%c0_12, %c0_13, %c0_14] : memref<4x16x64xf32, #tpu.memory_space<vmem>>, vector<1x16x64xf32>
    %16 = vector.shape_cast %15 : vector<1x16x64xf32> to vector<16x64xf32>
    %17 = vector.shape_cast %14 : vector<16x64xf32> to vector<1x16x64xf32>
    tpu.vector_store %arg9[%c0_12, %c0_13, %c0_14], %17 {strides = array<i32>} : memref<4x16x64xf32, #tpu.memory_space<vmem>>, vector<1x16x64xf32>,
    %18 = arith.mulf %14, %0 : vector<16x64xf32>
    %cst_15 = arith.constant dense<0.000000e+00> : vector<16xf32>
    %19 = vector.multi_reduction <add>, %18, %cst_15 [1] : vector<16x64xf32> to vector<16xf32>
    %20 = vector.shape_cast %19 : vector<16xf32> to vector<16x1xf32>
    %21 = vector.extract_strided_slice %5 {offsets = [0, 28], sizes = [16, 28], strides = [1, 1]} : vector<16x112xbf16> to vector<16x28xbf16>
    %22 = vector.extract_strided_slice %7 {offsets = [0, 4], sizes = [16, 4], strides = [1, 1]} : vector<16x16xbf16> to vector<16x4xbf16>
    %cst_16 = arith.constant dense<0.000000e+00> : vector<16x64xf32>
    %23 = tpu.matmul %21, %1, %cst_16 {dimension_numbers = #tpu.dot_dimension_numbers<[1], [0], [0], [1], [0, 0, 1, 1], [], []>} : vector<16x28xbf16>, vector<28x64xbf16>, vector<16x64xf32> -> vector<16x64xf32>
    %cst_17 = arith.constant dense<0.000000e+00> : vector<16x64xf32>
    %24 = tpu.matmul %22, %2, %cst_17 {dimension_numbers = #tpu.dot_dimension_numbers<[1], [0], [0], [1], [0, 0, 1, 1], [], []>} : vector<16x4xbf16>, vector<4x64xbf16>, vector<16x64xf32> -> vector<16x64xf32>
    %25 = arith.addf %23, %24 : vector<16x64xf32>
    %26 = vector.broadcast %3 : vector<1x64xf32> to vector<16x64xf32>
    %27 = arith.addf %25, %26 : vector<16x64xf32>
    %c1 = arith.constant 1 : index
    %c0_18 = arith.constant 0 : index
    %c0_19 = arith.constant 0 : index
    %28 = vector.load %arg9[%c1, %c0_18, %c0_19] : memref<4x16x64xf32, #tpu.memory_space<vmem>>, vector<1x16x64xf32>
    %29 = vector.shape_cast %28 : vector<1x16x64xf32> to vector<16x64xf32>
    %30 = vector.shape_cast %27 : vector<16x64xf32> to vector<1x16x64xf32>
    tpu.vector_store %arg9[%c1, %c0_18, %c0_19], %30 {strides = array<i32>} : memref<4x16x64xf32, #tpu.memory_space<vmem>>, vector<1x16x64xf32>,
    %31 = arith.mulf %27, %0 : vector<16x64xf32>
    %cst_20 = arith.constant dense<0.000000e+00> : vector<16xf32>
    %32 = vector.multi_reduction <add>, %31, %cst_20 [1] : vector<16x64xf32> to vector<16xf32>
    %33 = vector.shape_cast %32 : vector<16xf32> to vector<16x1xf32>
    %34 = vector.extract_strided_slice %5 {offsets = [0, 56], sizes = [16, 28], strides = [1, 1]} : vector<16x112xbf16> to vector<16x28xbf16>
    %35 = vector.extract_strided_slice %7 {offsets = [0, 8], sizes = [16, 4], strides = [1, 1]} : vector<16x16xbf16> to vector<16x4xbf16>
    %cst_21 = arith.constant dense<0.000000e+00> : vector<16x64xf32>
    %36 = tpu.matmul %34, %1, %cst_21 {dimension_numbers = #tpu.dot_dimension_numbers<[1], [0], [0], [1], [0, 0, 1, 1], [], []>} : vector<16x28xbf16>, vector<28x64xbf16>, vector<16x64xf32> -> vector<16x64xf32>
    %cst_22 = arith.constant dense<0.000000e+00> : vector<16x64xf32>
    %37 = tpu.matmul %35, %2, %cst_22 {dimension_numbers = #tpu.dot_dimension_numbers<[1], [0], [0], [1], [0, 0, 1, 1], [], []>} : vector<16x4xbf16>, vector<4x64xbf16>, vector<16x64xf32> -> vector<16x64xf32>
    %38 = arith.addf %36, %37 : vector<16x64xf32>
    %39 = vector.broadcast %3 : vector<1x64xf32> to vector<16x64xf32>
    %40 = arith.addf %38, %39 : vector<16x64xf32>
    %c2 = arith.constant 2 : index
    %c0_23 = arith.constant 0 : index
    %c0_24 = arith.constant 0 : index
    %41 = vector.load %arg9[%c2, %c0_23, %c0_24] : memref<4x16x64xf32, #tpu.memory_space<vmem>>, vector<1x16x64xf32>
    %42 = vector.shape_cast %41 : vector<1x16x64xf32> to vector<16x64xf32>
    %43 = vector.shape_cast %40 : vector<16x64xf32> to vector<1x16x64xf32>
    tpu.vector_store %arg9[%c2, %c0_23, %c0_24], %43 {strides = array<i32>} : memref<4x16x64xf32, #tpu.memory_space<vmem>>, vector<1x16x64xf32>,
    %44 = arith.mulf %40, %0 : vector<16x64xf32>
    %cst_25 = arith.constant dense<0.000000e+00> : vector<16xf32>
    %45 = vector.multi_reduction <add>, %44, %cst_25 [1] : vector<16x64xf32> to vector<16xf32>
    %46 = vector.shape_cast %45 : vector<16xf32> to vector<16x1xf32>
    %47 = vector.extract_strided_slice %5 {offsets = [0, 84], sizes = [16, 28], strides = [1, 1]} : vector<16x112xbf16> to vector<16x28xbf16>
    %48 = vector.extract_strided_slice %7 {offsets = [0, 12], sizes = [16, 4], strides = [1, 1]} : vector<16x16xbf16> to vector<16x4xbf16>
    %cst_26 = arith.constant dense<0.000000e+00> : vector<16x64xf32>
    %49 = tpu.matmul %47, %1, %cst_26 {dimension_numbers = #tpu.dot_dimension_numbers<[1], [0], [0], [1], [0, 0, 1, 1], [], []>} : vector<16x28xbf16>, vector<28x64xbf16>, vector<16x64xf32> -> vector<16x64xf32>
    %cst_27 = arith.constant dense<0.000000e+00> : vector<16x64xf32>
    %50 = tpu.matmul %48, %2, %cst_27 {dimension_numbers = #tpu.dot_dimension_numbers<[1], [0], [0], [1], [0, 0, 1, 1], [], []>} : vector<16x4xbf16>, vector<4x64xbf16>, vector<16x64xf32> -> vector<16x64xf32>
    %51 = arith.addf %49, %50 : vector<16x64xf32>
    %52 = vector.broadcast %3 : vector<1x64xf32> to vector<16x64xf32>
    %53 = arith.addf %51, %52 : vector<16x64xf32>
    %c3 = arith.constant 3 : index
    %c0_28 = arith.constant 0 : index
    %c0_29 = arith.constant 0 : index
    %54 = vector.load %arg9[%c3, %c0_28, %c0_29] : memref<4x16x64xf32, #tpu.memory_space<vmem>>, vector<1x16x64xf32>
    %55 = vector.shape_cast %54 : vector<1x16x64xf32> to vector<16x64xf32>
    %56 = vector.shape_cast %53 : vector<16x64xf32> to vector<1x16x64xf32>
    tpu.vector_store %arg9[%c3, %c0_28, %c0_29], %56 {strides = array<i32>} : memref<4x16x64xf32, #tpu.memory_space<vmem>>, vector<1x16x64xf32>,
    %57 = arith.mulf %53, %0 : vector<16x64xf32>
    %cst_30 = arith.constant dense<0.000000e+00> : vector<16xf32>
    %58 = vector.multi_reduction <add>, %57, %cst_30 [1] : vector<16x64xf32> to vector<16xf32>
    %59 = vector.shape_cast %58 : vector<16xf32> to vector<16x1xf32>
    %60 = tpu.concatenate %20, %33, %46, %59 in 1 : vector<16x1xf32>, vector<16x1xf32>, vector<16x1xf32>, vector<16x1xf32> -> vector<16x4xf32>
    %c0_31 = arith.constant 0 : index
    %c0_32 = arith.constant 0 : index
    %61 = vector.load %arg4[%c0_31, %c0_32] : memref<16x4xf32, #tpu.memory_space<vmem>>, vector<16x4xf32>
    %cst_33 = arith.constant 0.000000e+00 : f32
    %62 = vector.broadcast %cst_33 : f32 to vector<16x4xf32>
    %63 = arith.cmpf oeq, %61, %62 : vector<16x4xf32>
    %cst_34 = arith.constant -1.000000e+09 : f32
    %64 = vector.broadcast %cst_34 : f32 to vector<16x4xf32>
    %65 = arith.select %63, %64, %60 : vector<16x4xi1>, vector<16x4xf32>
    %cst_35 = arith.constant dense<0xFF800000> : vector<16xf32>
    %66 = vector.multi_reduction <maximumf>, %65, %cst_35 [1] : vector<16x4xf32> to vector<16xf32>
    %67 = vector.shape_cast %66 : vector<16xf32> to vector<16x1xf32>
    %68 = vector.broadcast %67 : vector<16x1xf32> to vector<16x4xf32>
    %69 = arith.subf %65, %68 : vector<16x4xf32>
    %70 = math.exp %69 : vector<16x4xf32>
    %cst_36 = arith.constant dense<0.000000e+00> : vector<16xf32>
    %71 = vector.multi_reduction <add>, %70, %cst_36 [1] : vector<16x4xf32> to vector<16xf32>
    %72 = vector.shape_cast %71 : vector<16xf32> to vector<16x1xf32>
    %73 = tpu.reciprocal %72 {approx = true} : vector<16x1xf32> -> vector<16x1xf32>
    %74 = vector.broadcast %73 : vector<16x1xf32> to vector<16x4xf32>
    %75 = arith.mulf %70, %74 : vector<16x4xf32>
    %76 = vector.extract_strided_slice %75 {offsets = [0, 0], sizes = [16, 1], strides = [1, 1]} : vector<16x4xf32> to vector<16x1xf32>
    %c0_37 = arith.constant 0 : index
    %c0_38 = arith.constant 0 : index
    %c0_39 = arith.constant 0 : index
    %77 = vector.load %arg9[%c0_37, %c0_38, %c0_39] : memref<4x16x64xf32, #tpu.memory_space<vmem>>, vector<1x16x64xf32>
    %78 = vector.shape_cast %77 : vector<1x16x64xf32> to vector<16x64xf32>
    %79 = vector.broadcast %76 : vector<16x1xf32> to vector<16x64xf32>
    %80 = arith.mulf %79, %78 : vector<16x64xf32>
    %81 = arith.addf %0, %80 : vector<16x64xf32>
    %82 = vector.extract_strided_slice %75 {offsets = [0, 1], sizes = [16, 1], strides = [1, 1]} : vector<16x4xf32> to vector<16x1xf32>
    %c1_40 = arith.constant 1 : index
    %c0_41 = arith.constant 0 : index
    %c0_42 = arith.constant 0 : index
    %83 = vector.load %arg9[%c1_40, %c0_41, %c0_42] : memref<4x16x64xf32, #tpu.memory_space<vmem>>, vector<1x16x64xf32>
    %84 = vector.shape_cast %83 : vector<1x16x64xf32> to vector<16x64xf32>
    %85 = vector.broadcast %82 : vector<16x1xf32> to vector<16x64xf32>
    %86 = arith.mulf %85, %84 : vector<16x64xf32>
    %87 = arith.addf %81, %86 : vector<16x64xf32>
    %88 = vector.extract_strided_slice %75 {offsets = [0, 2], sizes = [16, 1], strides = [1, 1]} : vector<16x4xf32> to vector<16x1xf32>
    %c2_43 = arith.constant 2 : index
    %c0_44 = arith.constant 0 : index
    %c0_45 = arith.constant 0 : index
    %89 = vector.load %arg9[%c2_43, %c0_44, %c0_45] : memref<4x16x64xf32, #tpu.memory_space<vmem>>, vector<1x16x64xf32>
    %90 = vector.shape_cast %89 : vector<1x16x64xf32> to vector<16x64xf32>
    %91 = vector.broadcast %88 : vector<16x1xf32> to vector<16x64xf32>
    %92 = arith.mulf %91, %90 : vector<16x64xf32>
    %93 = arith.addf %87, %92 : vector<16x64xf32>
    %94 = vector.extract_strided_slice %75 {offsets = [0, 3], sizes = [16, 1], strides = [1, 1]} : vector<16x4xf32> to vector<16x1xf32>
    %c3_46 = arith.constant 3 : index
    %c0_47 = arith.constant 0 : index
    %c0_48 = arith.constant 0 : index
    %95 = vector.load %arg9[%c3_46, %c0_47, %c0_48] : memref<4x16x64xf32, #tpu.memory_space<vmem>>, vector<1x16x64xf32>
    %96 = vector.shape_cast %95 : vector<1x16x64xf32> to vector<16x64xf32>
    %97 = vector.broadcast %94 : vector<16x1xf32> to vector<16x64xf32>
    %98 = arith.mulf %97, %96 : vector<16x64xf32>
    %99 = arith.addf %93, %98 : vector<16x64xf32>
    %c0_49 = arith.constant 0 : index
    %c0_50 = arith.constant 0 : index
    %100 = vector.load %arg8[%c0_49, %c0_50] : memref<16x64xf32, #tpu.memory_space<vmem>>, vector<16x64xf32>
    tpu.vector_store %arg8[%c0_49, %c0_50], %99 {strides = array<i32>} : memref<16x64xf32, #tpu.memory_space<vmem>>, vector<16x64xf32>,
    return
  }
  func.func @transform_0(%arg0: i32) -> (i32, i32) {
    %c0_i32 = arith.constant 0 : i32
    %c0_i32_0 = arith.constant 0 : i32
    return %arg0, %c0_i32 : i32, i32
  }
  func.func @transform_1(%arg0: i32) -> (i32, i32) {
    %c0_i32 = arith.constant 0 : i32
    %c0_i32_0 = arith.constant 0 : i32
    return %arg0, %c0_i32 : i32, i32
  }
  func.func @transform_2(%arg0: i32) -> (i32, i32) {
    %c0_i32 = arith.constant 0 : i32
    %c0_i32_0 = arith.constant 0 : i32
    return %arg0, %c0_i32 : i32, i32
  }
  func.func @transform_3(%arg0: i32) -> (i32, i32) {
    %c0_i32 = arith.constant 0 : i32
    %c0_i32_0 = arith.constant 0 : i32
    return %arg0, %c0_i32 : i32, i32
  }
  func.func @transform_4(%arg0: i32) -> (i32, i32) {
    %c0_i32 = arith.constant 0 : i32
    %c0_i32_0 = arith.constant 0 : i32
    %c0_i32_1 = arith.constant 0 : i32
    return %c0_i32, %c0_i32_0 : i32, i32
  }
  func.func @transform_5(%arg0: i32) -> (i32, i32) {
    %c0_i32 = arith.constant 0 : i32
    %c0_i32_0 = arith.constant 0 : i32
    %c0_i32_1 = arith.constant 0 : i32
    return %c0_i32, %c0_i32_0 : i32, i32
  }
  func.func @transform_6(%arg0: i32) -> (i32, i32) {
    %c0_i32 = arith.constant 0 : i32
    %c0_i32_0 = arith.constant 0 : i32
    %c0_i32_1 = arith.constant 0 : i32
    return %c0_i32, %c0_i32_0 : i32, i32
  }
  func.func @transform_7(%arg0: i32) -> (i32, i32) {
    %c0_i32 = arith.constant 0 : i32
    %c0_i32_0 = arith.constant 0 : i32
    return %arg0, %c0_i32 : i32, i32
  }
}

</mosaic_0001>

<llo_original>
// kernel: tpu_custom_call.1
$region0: #{tpu_custom_call.1}
  #allocation0 [shape = 'u32[]', space=smem, size = 0x4, offset = 0x4, fixed_abs, tag = 'smem constant byte address 0x4 - core index']
  #allocation1 [shape = 'u32[144,128]{1,0:T(1,128)}', space=vmem, size = 0x12000, scoped, tag = 'internal scratch']
  #allocation2 [shape = 'f32[4,16,64]{2,1,0:T(8,128)}', space=vmem, size = 0x8000, scoped, tag = 'scratch operand']
  %s0 = inlined_call_operand.vmem [shape: f32[16,112], index: 0, kind: input, shape index: {}]
  %s1 = inlined_call_operand.hbm [shape: f32[16,16], index: 1, kind: input, shape index: {}]
  %s2 = inlined_call_operand.hbm [shape: f32[16,64], index: 2, kind: input, shape index: {}]
  %s3 = inlined_call_operand.vmem [shape: f32[16,4], index: 3, kind: input, shape index: {}]
  %s4 = inlined_call_operand.vmem [shape: bf16[28,64], index: 4, kind: input, shape index: {}]
  %s5 = inlined_call_operand.vmem [shape: bf16[4,64], index: 5, kind: input, shape index: {}]
  %s6 = inlined_call_operand.vmem [shape: f32[1,64], index: 6, kind: input, shape index: {}]
  %s7 = inlined_call_operand.hbm [shape: f32[16,64], index: 7, kind: output, shape index: {}]
  %s8 = sld [smem:[#allocation0]]
  $region46: #{tpu_custom_call.1} parent=0
    _
  %s10 = ssub.s32 1, %s8
  %s11 = scalar_select 0, %s10, %s8
  $region1: #{tpu_custom_call.1} parent=0
    #allocation3 [shape = 'u8[8192]{0}', space=vmem, size = 0x2000, scoped, tag = 'input window, operand 1, single buffered']
    #allocation4 [shape = 's32[1]{0}', space=sflag, size = 0x4, scoped, tag = 'scoped memory for tpu_custom_call.1']
    #allocation5 [shape = 's32[1]{0}', space=sflag, size = 0x4, scoped, tag = 'scoped memory for tpu_custom_call.1']
    #allocation6 [shape = 'u8[8192]{0}', space=vmem, size = 0x2000, scoped, tag = 'input window, operand 2, single buffered']
    #allocation7 [shape = 's32[1]{0}', space=sflag, size = 0x4, scoped, tag = 'scoped memory for tpu_custom_call.1']
    #allocation8 [shape = 'u8[8192]{0}', space=vmem, size = 0x2000, scoped, tag = 'output window, operand 0, single buffered']
    %12 = vsyncpa [#allocation4], 0
    %13 = vsyncpa [#allocation7], 0
    %14 = vsyncpa [#allocation5], 0
    // Predicated region
    $region2: #{tpu_custom_call.1} parent=1 // pred_check
      _
    $region3: #{tpu_custom_call.1} parent=1 // pred_check_branch
      %16 = sbr.rel (0) target = $region5
    $region4: #{tpu_custom_call.1} parent=1 // pred_region
      _
    $region5: #{tpu_custom_call.1} parent=1 // pred_fallthru
      _
    // Predicated region
    $region6: #{tpu_custom_call.1} parent=1 // pred_check
      _
    $region7: #{tpu_custom_call.1} parent=1 // pred_check_branch
      %18 = sbr.rel (0) target = $region9
    $region8: #{tpu_custom_call.1} parent=1 // pred_region
      %s20 = ssub.s32 256, 256
      %21 = vsyncadd [#allocation4], %s20
      %s22 = sshll.u32 [#allocation3], 4
      %s23 = int_to_ptr.vmem [resolvable:$true] %s22
      %28 = dma.hbm_to_vmem [thread:$0]  %s1, 256, %s23, [#allocation4], 128, 128, 8
    $region9: #{tpu_custom_call.1} parent=1 // pred_fallthru
      _
    // Predicated region
    $region10: #{tpu_custom_call.1} parent=1 // pred_check
      _
    $region11: #{tpu_custom_call.1} parent=1 // pred_check_branch
      %30 = sbr.rel (0) target = $region13
    $region12: #{tpu_custom_call.1} parent=1 // pred_region
      %s32 = ssub.s32 256, 256
      %33 = vsyncadd [#allocation7], %s32
      %s34 = sshll.u32 [#allocation6], 4
      %s35 = int_to_ptr.vmem [resolvable:$true] %s34
      %40 = dma.hbm_to_vmem [thread:$0]  %s2, 256, %s35, [#allocation7], 128, 128, 8
    $region13: #{tpu_custom_call.1} parent=1 // pred_fallthru
      _
    // Predicated region
    $region14: #{tpu_custom_call.1} parent=1 // pred_check
      _
    $region15: #{tpu_custom_call.1} parent=1 // pred_check_branch
      %42 = sbr.rel (0) target = $region17
    $region16: #{tpu_custom_call.1} parent=1 // pred_region
      _
    $region17: #{tpu_custom_call.1} parent=1 // pred_fallthru
      _
    // Predicated region
    $region18: #{tpu_custom_call.1} parent=1 // pred_check
      _
    $region19: #{tpu_custom_call.1} parent=1 // pred_check_branch
      %44 = sbr.rel (0) target = $region21
    $region20: #{tpu_custom_call.1} parent=1 // pred_region
      _
    $region21: #{tpu_custom_call.1} parent=1 // pred_fallthru
      _
    // Predicated region
    $region22: #{tpu_custom_call.1} parent=1 // pred_check
      _
    $region23: #{tpu_custom_call.1} parent=1 // pred_check_branch
      %46 = sbr.rel (0) target = $region25
    $region24: #{tpu_custom_call.1} parent=1 // pred_region
      _
    $region25: #{tpu_custom_call.1} parent=1 // pred_fallthru
      _
    // Predicated region
    $region26: #{tpu_custom_call.1} parent=1 // pred_check
      _
    $region27: #{tpu_custom_call.1} parent=1 // pred_check_branch
      %48 = sbr.rel (0) target = $region29
    $region28: #{tpu_custom_call.1} parent=1 // pred_region
      _
    $region29: #{tpu_custom_call.1} parent=1 // pred_fallthru
      _
    // Predicated region
    $region30: #{tpu_custom_call.1} parent=1 // pred_check
      _
    $region31: #{tpu_custom_call.1} parent=1 // pred_check_branch
      %50 = sbr.rel (0) target = $region33
    $region32: #{tpu_custom_call.1} parent=1 // pred_region
      %51 = dma.done [#allocation4], 256
    $region33: #{tpu_custom_call.1} parent=1 // pred_fallthru
      _
    // Predicated region
    $region34: #{tpu_custom_call.1} parent=1 // pred_check
      _
    $region35: #{tpu_custom_call.1} parent=1 // pred_check_branch
      %53 = sbr.rel (0) target = $region37
    $region36: #{tpu_custom_call.1} parent=1 // pred_region
      %54 = dma.done [#allocation7], 256
    $region37: #{tpu_custom_call.1} parent=1 // pred_fallthru
      _
    %v56 = vld [vmem:[#allocation6] sm:$0xff]
    %v57 = vld [vmem:[#allocation6 + $0x8] sm:$0xff]
    %v58 = vld [vmem:[%s4] sm:$0xf]
    %v59 = vld [vmem:[%s4 + $0x4] sm:$0xf]
    %v60 = vld [vmem:[%s4 + $0x8] sm:$0xf]
    %v61 = vld [vmem:[%s4 + $0xc] sm:$0x3]
    %v62 = vld [vmem:[%s5] sm:$0x3]
    %v63 = vld [vmem:[%s6] sm:$0x1]
    %v64 = vld [vmem:[%s0] sm:$0xff]
    %v65 = vld [vmem:[%s0 + $0x8] sm:$0xff]
    %v66 = vpack.c.bf16 %v65, %v64
    %v67 = vld [vmem:[#allocation3] sm:$0xff]
    %v68 = vld [vmem:[#allocation3 + $0x8] sm:$0xff]
    %v69 = vpack.c.bf16 %v68, %v67
    %vm70 = vcmask 31744
    %v72 = vsel %vm70, %v69, 0
    %vm74 = vcmask 1041408
    %v76 = vsel %vm74, %v62, 0
    %78 = vmatprep.subr.bf16.mxu0 0
    %79 = vmatpush1.bf16.msra.mxu0 %v76
    %80 = vmatprep.subr.bf16.mxu0 0
    %81 = vmatpush1.bf16.msra.mxu0 0
    %82 = vmatprep.subr.bf16.mxu0 0
    %83 = vmatpush1.bf16.msra.mxu0 0
    %84 = vmatprep.subr.bf16.mxu0 0
    %85 = vmatpush1.bf16.msra.mxu0 0
    %86 = vmatprep.subr.bf16.mxu0 0
    %87 = vmatpush1.bf16.msra.mxu0 0
    %88 = vmatprep.subr.bf16.mxu0 0
    %89 = vmatpush1.bf16.msra.mxu0 0
    %90 = vmatprep.subr.bf16.mxu0 0
    %91 = vmatpush1.bf16.msra.mxu0 0
    %92 = vmatprep.subr.bf16.mxu0 0
    %93 = vmatpush1.bf16.msra.mxu0 0
    %94 = vmatprep.subr.bf16.mxu0 0
    %95 = vmatpush1.bf16.msra.mxu0 0
    %96 = vmatprep.subr.bf16.mxu0 0
    %97 = vmatpush1.bf16.msra.mxu0 0
    %98 = vmatprep.subr.bf16.mxu0 0
    %99 = vmatpush1.bf16.msra.mxu0 0
    %100 = vmatprep.subr.bf16.mxu0 0
    %101 = vmatpush1.bf16.msra.mxu0 0
    %102 = vmatprep.subr.bf16.mxu0 0
    %103 = vmatpush1.bf16.msra.mxu0 0
    %104 = vmatprep.subr.bf16.mxu0 0
    %105 = vmatpush1.bf16.msra.mxu0 0
    %106 = vmatprep.subr.bf16.mxu0 0
    %107 = vmatpush1.bf16.msra.mxu0 0
    %108 = vmatprep.subr.bf16.mxu0 0
    %109 = vmatpush1.bf16.msra.mxu0 0
    %110 = vmatprep.mubr.bf16.mxu0 0
    %111 = vmatmul.mubr.bf16.gmra.mrb[0].mxu0 %v72
    %v112 = vpop.f32.mrb[0].mxu0
    %v113 = vadd.f32 0.0, %v112
    %v114 = vpop.f32.mrb[0].mxu0
    %v115 = vpop.f32.mrb[0].mxu0
    %v116 = vadd.f32 0.0, %v115
    %v117 = vpop.f32.mrb[0].mxu0
    %118 = vdwg.mxu0
    %v123 = vunpack.c.l.b16 %v58
    %v124 = vunpack.c.l.b16 %v59
    %v125 = vunpack.c.l.b16 %v60
    %v126 = vunpack.c.l.b16 %v61
    %v127 = vpack.c.b16 %v124, %v123
    %v128 = vpack.c.b16 %v126, %v125
    %vm130 = vcmask 228352
    %v132 = vsel %vm130, %v66, 0
    %vm134 = vcmask 1045504
    %v136 = vsel %vm134, %v128, 0
    %138 = vmatprep.subr.bf16.mxu0 0
    %139 = vmatpush1.bf16.msra.mxu0 %v127
    %140 = vmatprep.subr.bf16.mxu0 0
    %141 = vmatpush1.bf16.msra.mxu0 %v136
    %142 = vmatprep.subr.bf16.mxu0 0
    %143 = vmatpush1.bf16.msra.mxu0 0
    %144 = vmatprep.subr.bf16.mxu0 0
    %145 = vmatpush1.bf16.msra.mxu0 0
    %146 = vmatprep.subr.bf16.mxu0 0
    %147 = vmatpush1.bf16.msra.mxu0 0
    %148 = vmatprep.subr.bf16.mxu0 0
    %149 = vmatpush1.bf16.msra.mxu0 0
    %150 = vmatprep.subr.bf16.mxu0 0
    %151 = vmatpush1.bf16.msra.mxu0 0
    %152 = vmatprep.subr.bf16.mxu0 0
    %153 = vmatpush1.bf16.msra.mxu0 0
    %154 = vmatprep.subr.bf16.mxu0 0
    %155 = vmatpush1.bf16.msra.mxu0 0
    %156 = vmatprep.subr.bf16.mxu0 0
    %157 = vmatpush1.bf16.msra.mxu0 0
    %158 = vmatprep.subr.bf16.mxu0 0
    %159 = vmatpush1.bf16.msra.mxu0 0
    %160 = vmatprep.subr.bf16.mxu0 0
    %161 = vmatpush1.bf16.msra.mxu0 0
    %162 = vmatprep.subr.bf16.mxu0 0
    %163 = vmatpush1.bf16.msra.mxu0 0
    %164 = vmatprep.subr.bf16.mxu0 0
    %165 = vmatpush1.bf16.msra.mxu0 0
    %166 = vmatprep.subr.bf16.mxu0 0
    %167 = vmatpush1.bf16.msra.mxu0 0
    %168 = vmatprep.subr.bf16.mxu0 0
    %169 = vmatpush1.bf16.msra.mxu0 0
    %170 = vmatprep.mubr.bf16.mxu0 0
    %171 = vmatmul.mubr.bf16.gmra.mrb[0].mxu0 %v132
    %v172 = vpop.f32.mrb[0].mxu0
    %v173 = vadd.f32 %v113, %v172
    %v174 = vpop.f32.mrb[0].mxu0
    %v175 = vpop.f32.mrb[0].mxu0
    %v176 = vadd.f32 %v116, %v175
    %v177 = vpop.f32.mrb[0].mxu0
    %178 = vdwg.mxu0
    %v180 = vlaneseq
    %v181 = vshrl.u32 %v180, 7
    %v182 = vsub.s32 0, %v181
    %v183 = vrot.slane %v63, %v182
    %v185 = vadd.f32 %v173, %v183
    %v186 = vadd.f32 %v176, %v183
    %vm187 = vcmask 523264
    %188 = vst.msk [vmem:[#allocation2] sm:$0xff] %vm187, %v185
    %189 = vst.msk [vmem:[#allocation2 + $0x8] sm:$0xff] %vm187, %v186
    %v190 = vmul.f32 %v185, %v56
    %v191 = vmul.f32 %v186, %v57
    %v192 = vsel %vm187, %v190, 0.0
    %193 = vadd.xlane.f32.xlu0 %v192
    %v194 = vpop.xlane.xlu0 %193
    %v195 = vsel %vm187, %v191, 0.0
    %196 = vadd.xlane.f32.xlu0 %v195
    %v197 = vpop.xlane.xlu0 %196
    %199 = vrot.lane.b32.xlu0 %v69, 124
    %v200 = vpop.permute.xlu0 %199
    %v202 = vsel %vm70, %v200, 0
    %204 = vmatprep.subr.bf16.mxu0 0
    %205 = vmatpush1.bf16.msra.mxu0 %v76
    %206 = vmatprep.subr.bf16.mxu0 0
    %207 = vmatpush1.bf16.msra.mxu0 0
    %208 = vmatprep.subr.bf16.mxu0 0
    %209 = vmatpush1.bf16.msra.mxu0 0
    %210 = vmatprep.subr.bf16.mxu0 0
    %211 = vmatpush1.bf16.msra.mxu0 0
    %212 = vmatprep.subr.bf16.mxu0 0
    %213 = vmatpush1.bf16.msra.mxu0 0
    %214 = vmatprep.subr.bf16.mxu0 0
    %215 = vmatpush1.bf16.msra.mxu0 0
    %216 = vmatprep.subr.bf16.mxu0 0
    %217 = vmatpush1.bf16.msra.mxu0 0
    %218 = vmatprep.subr.bf16.mxu0 0
    %219 = vmatpush1.bf16.msra.mxu0 0
    %220 = vmatprep.subr.bf16.mxu0 0
    %221 = vmatpush1.bf16.msra.mxu0 0
    %222 = vmatprep.subr.bf16.mxu0 0
    %223 = vmatpush1.bf16.msra.mxu0 0
    %224 = vmatprep.subr.bf16.mxu0 0
    %225 = vmatpush1.bf16.msra.mxu0 0
    %226 = vmatprep.subr.bf16.mxu0 0
    %227 = vmatpush1.bf16.msra.mxu0 0
    %228 = vmatprep.subr.bf16.mxu0 0
    %229 = vmatpush1.bf16.msra.mxu0 0
    %230 = vmatprep.subr.bf16.mxu0 0
    %231 = vmatpush1.bf16.msra.mxu0 0
    %232 = vmatprep.subr.bf16.mxu0 0
    %233 = vmatpush1.bf16.msra.mxu0 0
    %234 = vmatprep.subr.bf16.mxu0 0
    %235 = vmatpush1.bf16.msra.mxu0 0
    %236 = vmatprep.mubr.bf16.mxu0 0
    %237 = vmatmul.mubr.bf16.gmra.mrb[0].mxu0 %v202
    %v238 = vpop.f32.mrb[0].mxu0
    %v239 = vadd.f32 0.0, %v238
    %v240 = vpop.f32.mrb[0].mxu0
    %v241 = vpop.f32.mrb[0].mxu0
    %v242 = vadd.f32 0.0, %v241
    %v243 = vpop.f32.mrb[0].mxu0
    %244 = vdwg.mxu0
    %246 = vrot.lane.b32.xlu0 %v66, 100
    %v247 = vpop.permute.xlu0 %246
    %v249 = vsel %vm130, %v247, 0
    %251 = vmatprep.subr.bf16.mxu0 0
    %252 = vmatpush1.bf16.msra.mxu0 %v127
    %253 = vmatprep.subr.bf16.mxu0 0
    %254 = vmatpush1.bf16.msra.mxu0 %v136
    %255 = vmatprep.subr.bf16.mxu0 0
    %256 = vmatpush1.bf16.msra.mxu0 0
    %257 = vmatprep.subr.bf16.mxu0 0
    %258 = vmatpush1.bf16.msra.mxu0 0
    %259 = vmatprep.subr.bf16.mxu0 0
    %260 = vmatpush1.bf16.msra.mxu0 0
    %261 = vmatprep.subr.bf16.mxu0 0
    %262 = vmatpush1.bf16.msra.mxu0 0
    %263 = vmatprep.subr.bf16.mxu0 0
    %264 = vmatpush1.bf16.msra.mxu0 0
    %265 = vmatprep.subr.bf16.mxu0 0
    %266 = vmatpush1.bf16.msra.mxu0 0
    %267 = vmatprep.subr.bf16.mxu0 0
    %268 = vmatpush1.bf16.msra.mxu0 0
    %269 = vmatprep.subr.bf16.mxu0 0
    %270 = vmatpush1.bf16.msra.mxu0 0
    %271 = vmatprep.subr.bf16.mxu0 0
    %272 = vmatpush1.bf16.msra.mxu0 0
    %273 = vmatprep.subr.bf16.mxu0 0
    %274 = vmatpush1.bf16.msra.mxu0 0
    %275 = vmatprep.subr.bf16.mxu0 0
    %276 = vmatpush1.bf16.msra.mxu0 0
    %277 = vmatprep.subr.bf16.mxu0 0
    %278 = vmatpush1.bf16.msra.mxu0 0
    %279 = vmatprep.subr.bf16.mxu0 0
    %280 = vmatpush1.bf16.msra.mxu0 0
    %281 = vmatprep.subr.bf16.mxu0 0
    %282 = vmatpush1.bf16.msra.mxu0 0
    %283 = vmatprep.mubr.bf16.mxu0 0
    %284 = vmatmul.mubr.bf16.gmra.mrb[0].mxu0 %v249
    %v285 = vpop.f32.mrb[0].mxu0
    %v286 = vadd.f32 %v239, %v285
    %v287 = vpop.f32.mrb[0].mxu0
    %v288 = vpop.f32.mrb[0].mxu0
    %v289 = vadd.f32 %v242, %v288
    %v290 = vpop.f32.mrb[0].mxu0
    %291 = vdwg.mxu0
    %v292 = vadd.f32 %v286, %v183
    %v293 = vadd.f32 %v289, %v183
    %s294 = scalar_lea.vmem [#allocation2], 16
    %295 = vst.msk [vmem:[%s294] sm:$0xff] %vm187, %v292
    %296 = vst.msk [vmem:[%s294 + $0x8] sm:$0xff] %vm187, %v293
    %v297 = vmul.f32 %v292, %v56
    %v298 = vmul.f32 %v293, %v57
    %v299 = vsel %vm187, %v297, 0.0
    %300 = vadd.xlane.f32.xlu0 %v299
    %v301 = vpop.xlane.xlu0 %300
    %v302 = vsel %vm187, %v298, 0.0
    %303 = vadd.xlane.f32.xlu0 %v302
    %v304 = vpop.xlane.xlu0 %303
    %305 = vrot.lane.b32.xlu0 %v69, 120
    %v306 = vpop.permute.xlu0 %305
    %v308 = vsel %vm70, %v306, 0
    %310 = vmatprep.subr.bf16.mxu0 0
    %311 = vmatpush1.bf16.msra.mxu0 %v76
    %312 = vmatprep.subr.bf16.mxu0 0
    %313 = vmatpush1.bf16.msra.mxu0 0
    %314 = vmatprep.subr.bf16.mxu0 0
    %315 = vmatpush1.bf16.msra.mxu0 0
    %316 = vmatprep.subr.bf16.mxu0 0
    %317 = vmatpush1.bf16.msra.mxu0 0
    %318 = vmatprep.subr.bf16.mxu0 0
    %319 = vmatpush1.bf16.msra.mxu0 0
    %320 = vmatprep.subr.bf16.mxu0 0
    %321 = vmatpush1.bf16.msra.mxu0 0
    %322 = vmatprep.subr.bf16.mxu0 0
    %323 = vmatpush1.bf16.msra.mxu0 0
    %324 = vmatprep.subr.bf16.mxu0 0
    %325 = vmatpush1.bf16.msra.mxu0 0
    %326 = vmatprep.subr.bf16.mxu0 0
    %327 = vmatpush1.bf16.msra.mxu0 0
    %328 = vmatprep.subr.bf16.mxu0 0
    %329 = vmatpush1.bf16.msra.mxu0 0
    %330 = vmatprep.subr.bf16.mxu0 0
    %331 = vmatpush1.bf16.msra.mxu0 0
    %332 = vmatprep.subr.bf16.mxu0 0
    %333 = vmatpush1.bf16.msra.mxu0 0
    %334 = vmatprep.subr.bf16.mxu0 0
    %335 = vmatpush1.bf16.msra.mxu0 0
    %336 = vmatprep.subr.bf16.mxu0 0
    %337 = vmatpush1.bf16.msra.mxu0 0
    %338 = vmatprep.subr.bf16.mxu0 0
    %339 = vmatpush1.bf16.msra.mxu0 0
    %340 = vmatprep.subr.bf16.mxu0 0
    %341 = vmatpush1.bf16.msra.mxu0 0
    %342 = vmatprep.mubr.bf16.mxu0 0
    %343 = vmatmul.mubr.bf16.gmra.mrb[0].mxu0 %v308
    %v344 = vpop.f32.mrb[0].mxu0
    %v345 = vadd.f32 0.0, %v344
    %v346 = vpop.f32.mrb[0].mxu0
    %v347 = vpop.f32.mrb[0].mxu0
    %v348 = vadd.f32 0.0, %v347
    %v349 = vpop.f32.mrb[0].mxu0
    %350 = vdwg.mxu0
    %351 = vrot.lane.b32.xlu0 %v66, 72
    %v352 = vpop.permute.xlu0 %351
    %v354 = vsel %vm130, %v352, 0
    %356 = vmatprep.subr.bf16.mxu0 0
    %357 = vmatpush1.bf16.msra.mxu0 %v127
    %358 = vmatprep.subr.bf16.mxu0 0
    %359 = vmatpush1.bf16.msra.mxu0 %v136
    %360 = vmatprep.subr.bf16.mxu0 0
    %361 = vmatpush1.bf16.msra.mxu0 0
    %362 = vmatprep.subr.bf16.mxu0 0
    %363 = vmatpush1.bf16.msra.mxu0 0
    %364 = vmatprep.subr.bf16.mxu0 0
    %365 = vmatpush1.bf16.msra.mxu0 0
    %366 = vmatprep.subr.bf16.mxu0 0
    %367 = vmatpush1.bf16.msra.mxu0 0
    %368 = vmatprep.subr.bf16.mxu0 0
    %369 = vmatpush1.bf16.msra.mxu0 0
    %370 = vmatprep.subr.bf16.mxu0 0
    %371 = vmatpush1.bf16.msra.mxu0 0
    %372 = vmatprep.subr.bf16.mxu0 0
    %373 = vmatpush1.bf16.msra.mxu0 0
    %374 = vmatprep.subr.bf16.mxu0 0
    %375 = vmatpush1.bf16.msra.mxu0 0
    %376 = vmatprep.subr.bf16.mxu0 0
    %377 = vmatpush1.bf16.msra.mxu0 0
    %378 = vmatprep.subr.bf16.mxu0 0
    %379 = vmatpush1.bf16.msra.mxu0 0
    %380 = vmatprep.subr.bf16.mxu0 0
    %381 = vmatpush1.bf16.msra.mxu0 0
    %382 = vmatprep.subr.bf16.mxu0 0
    %383 = vmatpush1.bf16.msra.mxu0 0
    %384 = vmatprep.subr.bf16.mxu0 0
    %385 = vmatpush1.bf16.msra.mxu0 0
    %386 = vmatprep.subr.bf16.mxu0 0
    %387 = vmatpush1.bf16.msra.mxu0 0
    %388 = vmatprep.mubr.bf16.mxu0 0
    %389 = vmatmul.mubr.bf16.gmra.mrb[0].mxu0 %v354
    %v390 = vpop.f32.mrb[0].mxu0
    %v391 = vadd.f32 %v345, %v390
    %v392 = vpop.f32.mrb[0].mxu0
    %v393 = vpop.f32.mrb[0].mxu0
    %v394 = vadd.f32 %v348, %v393
    %v395 = vpop.f32.mrb[0].mxu0
    %396 = vdwg.mxu0
    %v397 = vadd.f32 %v391, %v183
    %v398 = vadd.f32 %v394, %v183
    %s399 = scalar_lea.vmem [#allocation2], 32
    %400 = vst.msk [vmem:[%s399] sm:$0xff] %vm187, %v397
    %401 = vst.msk [vmem:[%s399 + $0x8] sm:$0xff] %vm187, %v398
    %v402 = vmul.f32 %v397, %v56
    %v403 = vmul.f32 %v398, %v57
    %v404 = vsel %vm187, %v402, 0.0
    %405 = vadd.xlane.f32.xlu0 %v404
    %v406 = vpop.xlane.xlu0 %405
    %v407 = vsel %vm187, %v403, 0.0
    %408 = vadd.xlane.f32.xlu0 %v407
    %v409 = vpop.xlane.xlu0 %408
    %410 = vrot.lane.b32.xlu0 %v69, 116
    %v411 = vpop.permute.xlu0 %410
    %v413 = vsel %vm70, %v411, 0
    %415 = vmatprep.subr.bf16.mxu0 0
    %416 = vmatpush1.bf16.msra.mxu0 %v76
    %417 = vmatprep.subr.bf16.mxu0 0
    %418 = vmatpush1.bf16.msra.mxu0 0
    %419 = vmatprep.subr.bf16.mxu0 0
    %420 = vmatpush1.bf16.msra.mxu0 0
    %421 = vmatprep.subr.bf16.mxu0 0
    %422 = vmatpush1.bf16.msra.mxu0 0
    %423 = vmatprep.subr.bf16.mxu0 0
    %424 = vmatpush1.bf16.msra.mxu0 0
    %425 = vmatprep.subr.bf16.mxu0 0
    %426 = vmatpush1.bf16.msra.mxu0 0
    %427 = vmatprep.subr.bf16.mxu0 0
    %428 = vmatpush1.bf16.msra.mxu0 0
    %429 = vmatprep.subr.bf16.mxu0 0
    %430 = vmatpush1.bf16.msra.mxu0 0
    %431 = vmatprep.subr.bf16.mxu0 0
    %432 = vmatpush1.bf16.msra.mxu0 0
    %433 = vmatprep.subr.bf16.mxu0 0
    %434 = vmatpush1.bf16.msra.mxu0 0
    %435 = vmatprep.subr.bf16.mxu0 0
    %436 = vmatpush1.bf16.msra.mxu0 0
    %437 = vmatprep.subr.bf16.mxu0 0
    %438 = vmatpush1.bf16.msra.mxu0 0
    %439 = vmatprep.subr.bf16.mxu0 0
    %440 = vmatpush1.bf16.msra.mxu0 0
    %441 = vmatprep.subr.bf16.mxu0 0
    %442 = vmatpush1.bf16.msra.mxu0 0
    %443 = vmatprep.subr.bf16.mxu0 0
    %444 = vmatpush1.bf16.msra.mxu0 0
    %445 = vmatprep.subr.bf16.mxu0 0
    %446 = vmatpush1.bf16.msra.mxu0 0
    %447 = vmatprep.mubr.bf16.mxu0 0
    %448 = vmatmul.mubr.bf16.gmra.mrb[0].mxu0 %v413
    %v449 = vpop.f32.mrb[0].mxu0
    %v450 = vadd.f32 0.0, %v449
    %v451 = vpop.f32.mrb[0].mxu0
    %v452 = vpop.f32.mrb[0].mxu0
    %v453 = vadd.f32 0.0, %v452
    %v454 = vpop.f32.mrb[0].mxu0
    %455 = vdwg.mxu0
    %456 = vrot.lane.b32.xlu0 %v66, 44
    %v457 = vpop.permute.xlu0 %456
    %v459 = vsel %vm130, %v457, 0
    %461 = vmatprep.subr.bf16.mxu0 0
    %462 = vmatpush1.bf16.msra.mxu0 %v127
    %463 = vmatprep.subr.bf16.mxu0 0
    %464 = vmatpush1.bf16.msra.mxu0 %v136
    %465 = vmatprep.subr.bf16.mxu0 0
    %466 = vmatpush1.bf16.msra.mxu0 0
    %467 = vmatprep.subr.bf16.mxu0 0
    %468 = vmatpush1.bf16.msra.mxu0 0
    %469 = vmatprep.subr.bf16.mxu0 0
    %470 = vmatpush1.bf16.msra.mxu0 0
    %471 = vmatprep.subr.bf16.mxu0 0
    %472 = vmatpush1.bf16.msra.mxu0 0
    %473 = vmatprep.subr.bf16.mxu0 0
    %474 = vmatpush1.bf16.msra.mxu0 0
    %475 = vmatprep.subr.bf16.mxu0 0
    %476 = vmatpush1.bf16.msra.mxu0 0
    %477 = vmatprep.subr.bf16.mxu0 0
    %478 = vmatpush1.bf16.msra.mxu0 0
    %479 = vmatprep.subr.bf16.mxu0 0
    %480 = vmatpush1.bf16.msra.mxu0 0
    %481 = vmatprep.subr.bf16.mxu0 0
    %482 = vmatpush1.bf16.msra.mxu0 0
    %483 = vmatprep.subr.bf16.mxu0 0
    %484 = vmatpush1.bf16.msra.mxu0 0
    %485 = vmatprep.subr.bf16.mxu0 0
    %486 = vmatpush1.bf16.msra.mxu0 0
    %487 = vmatprep.subr.bf16.mxu0 0
    %488 = vmatpush1.bf16.msra.mxu0 0
    %489 = vmatprep.subr.bf16.mxu0 0
    %490 = vmatpush1.bf16.msra.mxu0 0
    %491 = vmatprep.subr.bf16.mxu0 0
    %492 = vmatpush1.bf16.msra.mxu0 0
    %493 = vmatprep.mubr.bf16.mxu0 0
    %494 = vmatmul.mubr.bf16.gmra.mrb[0].mxu0 %v459
    %v495 = vpop.f32.mrb[0].mxu0
    %v496 = vadd.f32 %v450, %v495
    %v497 = vpop.f32.mrb[0].mxu0
    %v498 = vpop.f32.mrb[0].mxu0
    %v499 = vadd.f32 %v453, %v498
    %v500 = vpop.f32.mrb[0].mxu0
    %501 = vdwg.mxu0
    %v502 = vadd.f32 %v496, %v183
    %v503 = vadd.f32 %v499, %v183
    %s504 = scalar_lea.vmem [#allocation2], 48
    %505 = vst.msk [vmem:[%s504] sm:$0xff] %vm187, %v502
    %506 = vst.msk [vmem:[%s504 + $0x8] sm:$0xff] %vm187, %v503
    %v507 = vmul.f32 %v502, %v56
    %v508 = vmul.f32 %v503, %v57
    %v509 = vsel %vm187, %v507, 0.0
    %510 = vadd.xlane.f32.xlu0 %v509
    %v511 = vpop.xlane.xlu0 %510
    %v512 = vsel %vm187, %v508, 0.0
    %513 = vadd.xlane.f32.xlu0 %v512
    %v514 = vpop.xlane.xlu0 %513
    %vm515 = vcmask 7168
    %v516 = vsel %vm515, %v194, %v301
    %v517 = vsel %vm515, %v197, %v304
    %vm518 = vcmask 15360
    %v519 = vsel %vm518, %v516, %v406
    %v520 = vsel %vm518, %v517, %v409
    %vm521 = vcmask 23552
    %v522 = vsel %vm521, %v519, %v511
    %v523 = vsel %vm521, %v520, %v514
    %v524 = vld [vmem:[%s3] sm:$0xff]
    %v525 = vld [vmem:[%s3 + $0x8] sm:$0xff]
    %vm526 = vcmp.eq.f32.partialorder %v524, 0.0
    %vm527 = vcmp.eq.f32.partialorder %v525, 0.0
    %v528 = vsel %vm526, -1e+09, %v522
    %v529 = vsel %vm527, -1e+09, %v523
    %v530 = vsel %vm70, %v528, -inf
    %531 = vmax.xlane.f32.xlu0 %v530
    %v532 = vpop.xlane.xlu0 %531
    %v533 = vsel %vm70, %v529, -inf
    %534 = vmax.xlane.f32.xlu0 %v533
    %v535 = vpop.xlane.xlu0 %534
    %v536 = vsub.f32 %v528, %v532
    %v537 = vsub.f32 %v529, %v535
    %v538 = vmul.f32 %v536, 1.442695
    %v539 = vpow.pop %v538
    %v540 = vmul.f32 %v537, 1.442695
    %v541 = vpow.pop %v540
    %v542 = vsel %vm70, %v539, 0.0
    %543 = vadd.xlane.f32.xlu0 %v542
    %v544 = vpop.xlane.xlu0 %543
    %v545 = vsel %vm70, %v541, 0.0
    %546 = vadd.xlane.f32.xlu0 %v545
    %v547 = vpop.xlane.xlu0 %546
    %v548 = vrcp.pop %v544
    %v549 = vrcp.pop %v547
    %v550 = vmul.f32 %v539, %v548
    %v551 = vmul.f32 %v541, %v549
    %v552 = vld [vmem:[#allocation2] sm:$0xff]
    %v553 = vld [vmem:[#allocation2 + $0x8] sm:$0xff]
    %555 = vset.pattern.permute.xlu0 0
    %556 = vperm.xlu0 %555, %v550
    %v557 = vpop.permute.xlu0 %556
    %560 = vset.pattern.permute.xlu0 0
    %561 = vperm.xlu0 %560, %v551
    %v562 = vpop.permute.xlu0 %561
    %v564 = vmul.f32 %v557, %v552
    %v565 = vmul.f32 %v562, %v553
    %v566 = vadd.f32 %v56, %v564
    %v567 = vadd.f32 %v57, %v565
    %v568 = vld [vmem:[%s294] sm:$0xff]
    %v569 = vld [vmem:[%s294 + $0x8] sm:$0xff]
    %570 = vset.pattern.permute.xlu0 1
    %571 = vperm.xlu0 %570, %v550
    %v572 = vpop.permute.xlu0 %571
    %574 = vset.pattern.permute.xlu0 1
    %575 = vperm.xlu0 %574, %v551
    %v576 = vpop.permute.xlu0 %575
    %v578 = vmul.f32 %v572, %v568
    %v579 = vmul.f32 %v576, %v569
    %v580 = vadd.f32 %v566, %v578
    %v581 = vadd.f32 %v567, %v579
    %v582 = vld [vmem:[%s399] sm:$0xff]
    %v583 = vld [vmem:[%s399 + $0x8] sm:$0xff]
    %584 = vset.pattern.permute.xlu0 2
    %585 = vperm.xlu0 %584, %v550
    %v586 = vpop.permute.xlu0 %585
    %588 = vset.pattern.permute.xlu0 2
    %589 = vperm.xlu0 %588, %v551
    %v590 = vpop.permute.xlu0 %589
    %v592 = vmul.f32 %v586, %v582
    %v593 = vmul.f32 %v590, %v583
    %v594 = vadd.f32 %v580, %v592
    %v595 = vadd.f32 %v581, %v593
    %v596 = vld [vmem:[%s504] sm:$0xff]
    %v597 = vld [vmem:[%s504 + $0x8] sm:$0xff]
    %598 = vset.pattern.permute.xlu0 3
    %599 = vperm.xlu0 %598, %v550
    %v600 = vpop.permute.xlu0 %599
    %602 = vset.pattern.permute.xlu0 3
    %603 = vperm.xlu0 %602, %v551
    %v604 = vpop.permute.xlu0 %603
    %v606 = vmul.f32 %v600, %v596
    %v607 = vmul.f32 %v604, %v597
    %v608 = vadd.f32 %v594, %v606
    %v609 = vadd.f32 %v595, %v607
    %610 = vst.msk [vmem:[#allocation8] sm:$0xff] %vm187, %v608
    %611 = vst.msk [vmem:[#allocation8 + $0x8] sm:$0xff] %vm187, %v609
    // Predicated region
    $region38: #{tpu_custom_call.1} parent=1 // pred_check
      _
    $region39: #{tpu_custom_call.1} parent=1 // pred_check_branch
      %613 = sbr.rel (0) target = $region41
    $region40: #{tpu_custom_call.1} parent=1 // pred_region
      %s615 = ssub.s32 256, 256
      %616 = vsyncadd [#allocation5], %s615
      %s617 = sshll.u32 [#allocation8], 4
      %s618 = int_to_ptr.vmem [resolvable:$true] %s617
      %623 = dma.vmem_to_hbm [thread:$0]  %s618, 256, %s7, [#allocation5], 128, 128, 8
    $region41: #{tpu_custom_call.1} parent=1 // pred_fallthru
      _
    // Predicated region
    $region42: #{tpu_custom_call.1} parent=1 // pred_check
      _
    $region43: #{tpu_custom_call.1} parent=1 // pred_check_branch
      %625 = sbr.rel (0) target = $region45
    $region44: #{tpu_custom_call.1} parent=1 // pred_region
      %626 = dma.done [#allocation5], 256
    $region45: #{tpu_custom_call.1} parent=1 // pred_fallthru
      _
    %627 = vsyncpa [#allocation4], 1
    %628 = vsyncpa [#allocation7], 1
    %629 = vsyncpa [#allocation5], 1

</llo_original>
